<compile_context>
chip_gen: v5e
topology: v5e:2x2
jax: 0.10.0
libtpu: 0.0.40
codegen_flags: <defaults>
</compile_context>

<pallas_src>
import functools

import jax
import jax.numpy as jnp
from jax.experimental import pallas as pl
from jax.experimental.pallas import tpu as pltpu

IGNORE_INDEX = 255
SMOOTH = 1.0
_MAX_TILE_HW = 32768  # lane cap: bounds (C,T) f32 temporaries / accumulators


def _chip_params():
    """Per-generation step-size / split / VMEM knobs (safe defaults if unknown)."""
    kind = ""
    try:
        kind = jax.devices()[0].device_kind.lower()
    except Exception:
        pass
    if "v7" in kind or "7x" in kind:
        # 2 TCs/chip, 64 MiB VMEM/TC, ~3.2 TB/s HBM: bigger steps, tighter VMEM.
        return dict(target_block_bytes=int(3.5 * (1 << 20)), num_splits=2,
                    vmem_budget=40 << 20, vmem_cap=52 << 20)
    if "v6" in kind:
        return dict(target_block_bytes=2 << 20, num_splits=1,
                    vmem_budget=80 << 20, vmem_cap=100 << 20)
    if "v5" in kind:
        return dict(target_block_bytes=1 << 20, num_splits=1,
                    vmem_budget=80 << 20, vmem_cap=100 << 20)
    return dict(target_block_bytes=1 << 20, num_splits=1,
                vmem_budget=40 << 20, vmem_cap=48 << 20)


def _ce_dice_kernel(scal_ref, x_ref, t_ref, ce_ref, inter_ref,
                    *, hw, tiles_per_split, tile_hw, num_classes, ignore_index):
    """Per-tile hot path: class-axis softmax pieces + masked lane-wise accumulation."""
    si = pl.program_id(0)   # megacore split
    ni = pl.program_id(1)   # batch image
    ti = pl.program_id(2)   # HW tile within this split

    @pl.when(jnp.logical_and(ni == 0, ti == 0))
    def _init():
        ce_ref[...] = jnp.zeros_like(ce_ref)
        inter_ref[...] = jnp.zeros_like(inter_ref)

    hw_tile = si * tiles_per_split + ti          # unclamped linear HW-tile id
    start = hw_tile * tile_hw

    x = x_ref[0].astype(jnp.float32)             # (C, T) logits, classes on sublanes
    labels = t_ref[0].astype(jnp.int32)          # (1, T) labels, upcast in-register

    pix = jax.lax.broadcasted_iota(jnp.int32, (1, tile_hw), 1) + start
    pix_mask = pix < hw                          # masks remainder / ghost lanes

    # Sanitize masked lanes so exp() stays finite on garbage data.
    x = jnp.where(pix_mask, x, 0.0)              # (1,T) broadcasts over (C,T)

    # Dice label = CE label, except ignore_index replaced by target.min() when
    # the wrapper decided the replacement applies (scalar-prefetched flags).
    replace = scal_ref[0]
    tmin = scal_ref[1]
    is_ign = labels == ignore_index
    t_di = jnp.where(jnp.logical_and(replace != 0, is_ign), tmin, labels)

    # Numerically stable softmax pieces along the class (sublane) axis.
    m = jnp.max(x, axis=0, keepdims=True)                      # (1, T)
    ex = jnp.exp(x - m)                                        # (C, T) EUP
    logden = jnp.log(jnp.sum(ex, axis=0, keepdims=True))       # (1, T)

    # Single fused class-select reduce: logit at the dice label.  On every
    # CE-valid pixel (label != ignore_index) the dice label equals the CE
    # label, so x_tdi doubles as x[target] for the CE term.
    cls = jax.lax.broadcasted_iota(jnp.int32, (num_classes, tile_hw), 0)
    x_tdi = jnp.sum(jnp.where(cls == t_di, x, 0.0), axis=0, keepdims=True)  # (1,T)

    nll = logden + m - x_tdi                     # -log softmax[t_di], (1, T)

    # ---- CrossEntropy (ignore_index aware, reduction='mean' numerator) ----
    valid_ce = jnp.logical_and(pix_mask, jnp.logical_not(is_ign))
    ce_pp = jnp.where(valid_ce, nll, 0.0)

    # ---- Dice numerator: softmax value at the dice label (real classes only) ----
    valid_di = jnp.logical_and(
        pix_mask, jnp.logical_and(t_di >= 0, t_di < num_classes))
    inter_pp = jnp.where(valid_di, jnp.exp(-nll), 0.0)

    # Lane-wise accumulation; cross-lane reduction deferred to JAX glue.
    ce_ref[...] += ce_pp.reshape(1, 1, tile_hw)
    inter_ref[...] += inter_pp.reshape(1, 1, tile_hw)


def ce_dice_loss(logits, target, *, smooth=SMOOTH, ignore_index=IGNORE_INDEX):
    """CE_DiceLoss.forward(output=NCHW logits, target=NHW int labels) -> scalar."""
    N, C, H, W = logits.shape
    HW = H * W
    params = _chip_params()

    # Metadata-only reshapes: logits stay in their native dtype in HBM; labels
    # stay in their native dtype (cast happens in-register inside the kernel).
    x = logits.reshape(N, C, HW)
    t = target.reshape(N, 1, HW)

    # ---- Label statistics (single fused label pass; scalar outputs only) ----
    ti32 = t.astype(jnp.int32)
    is_ign = ti32 == ignore_index
    tmin = jnp.min(ti32)
    tmax = jnp.max(ti32)
    n_ign = jnp.sum(is_ign.astype(jnp.int32))
    n_valid_nonign = jnp.sum(jnp.logical_and(
        jnp.logical_not(is_ign),
        jnp.logical_and(ti32 >= 0, ti32 < C)).astype(jnp.int32))

    # Python `range(min, max)` semantics: replacement iff ignore_index not in
    # [tmin, tmax) and at least one pixel equals ignore_index.
    in_range = jnp.logical_and(tmin <= ignore_index, ignore_index < tmax)
    do_replace = jnp.logical_and(jnp.logical_not(in_range), n_ign > 0)

    # CE denominator (number of non-ignored pixels).
    cnt = jnp.float32(N * HW) - n_ign.astype(jnp.float32)

    # Dice target_flat.sum(): one-hot carries weight only for labels in [0, C).
    tmin_valid = jnp.logical_and(tmin >= 0, tmin < C).astype(jnp.float32)
    ign_valid = jnp.float32(1.0 if 0 <= ignore_index < C else 0.0)
    tsum = (n_valid_nonign.astype(jnp.float32)
            + n_ign.astype(jnp.float32) * jnp.where(do_replace, tmin_valid, ign_valid))

    scalars = jnp.stack([do_replace.astype(jnp.int32), tmin])

    # ---- Tile sizing from the TOTAL per-pixel footprint ----
    item = jnp.dtype(logits.dtype).itemsize
    lab_item = jnp.dtype(t.dtype).itemsize
    stream_bpp = C * item + lab_item                 # HBM bytes streamed per pixel
    work_bpp = (4 * C + 12) * 4                      # in-kernel f32/int32 working set
    vmem_bpp = 2 * stream_bpp + work_bpp + 4 * 4     # 2x-buffered inputs + temps + accs

    hw_pad = -(-HW // 128) * 128
    tile_hw = params["target_block_bytes"] // stream_bpp
    tile_hw = min(tile_hw, params["vmem_budget"] // vmem_bpp, _MAX_TILE_HW, hw_pad)
    tile_hw = max(128, tile_hw // 128 * 128)
    tile_hw = min(tile_hw, hw_pad)
    n_hw_tiles = -(-HW // tile_hw)

    # Leading grid axis: 2-way split only on v7x (one accumulator slot per TC);
    # single-TC chips run an un-split grid (no ghost-tile / writeback overhead).
    num_splits = max(1, min(params["num_splits"], n_hw_tiles))
    tiles_per_split = -(-n_hw_tiles // num_splits)

    # VMEM limit from actual block / accumulator / working-set sizes.
    in_block_bytes = tile_hw * stream_bpp
    acc_block_bytes = tile_hw * 4 * 2                # ce + inter f32 blocks
    used = 2 * in_block_bytes + 2 * acc_block_bytes + tile_hw * work_bpp
    vmem_limit = int(min(params["vmem_cap"],
                         max(16 << 20, int(used * 1.5) + (4 << 20))))

    def in_map(si, ni, ti, sref):
        hw_tile = jnp.minimum(si * tiles_per_split + ti, n_hw_tiles - 1)
        return (ni, 0, hw_tile)

    def out_map(si, ni, ti, sref):
        return (si, 0, 0)

    acc_shape = jax.ShapeDtypeStruct((num_splits, 1, tile_hw), jnp.float32)
    out_spec = pl.BlockSpec((1, 1, tile_hw), out_map)

    kernel = functools.partial(
        _ce_dice_kernel, hw=HW, tiles_per_split=tiles_per_split,
        tile_hw=tile_hw, num_classes=C, ignore_index=ignore_index)

    ce_acc, inter_acc = pl.pallas_call(
        kernel,
        out_shape=(acc_shape, acc_shape),
        grid_spec=pltpu.PrefetchScalarGridSpec(
            num_scalar_prefetch=1,
            grid=(num_splits, N, tiles_per_split),
            in_specs=[
                pl.BlockSpec((1, C, tile_hw), in_map),
                pl.BlockSpec((1, 1, tile_hw), in_map),
            ],
            out_specs=(out_spec, out_spec),
        ),
        compiler_params=pltpu.CompilerParams(
            dimension_semantics=("parallel", "arbitrary", "arbitrary"),
            vmem_limit_bytes=vmem_limit),
    )(scalars, x, t)

    # Final scalar arithmetic (glue).
    ce_sum = jnp.sum(ce_acc)
    inter = jnp.sum(inter_acc)
    osum = jnp.float32(N * HW)  # softmax rows sum to 1 exactly

    ce_loss = ce_sum / cnt
    dice_loss = 1.0 - (2.0 * inter + smooth) / (osum + tsum + smooth)
    return ce_loss + dice_loss


def _reference_loss(logits, target, *, num_classes, ignore_index=IGNORE_INDEX,
                    smooth=SMOOTH):
    """Pure-JAX reference mirroring the PyTorch CE_DiceLoss forward."""
    C = num_classes
    lg = logits.astype(jnp.float32)
    tgt = target.astype(jnp.int32)
    # CrossEntropy (mean over non-ignored pixels), computed before dice mutation.
    lsm = jax.nn.log_softmax(lg, axis=1)
    idx = jnp.clip(tgt, 0, C - 1)[:, None]
    nll = -jnp.take_along_axis(lsm, idx, axis=1)[:, 0]
    valid = tgt != ignore_index
    ce = jnp.sum(jnp.where(valid, nll, 0.0)) / jnp.sum(valid)
    # Dice with ignore-label replacement rule.
    tmin, tmax = jnp.min(tgt), jnp.max(tgt)
    in_range = jnp.logical_and(tmin <= ignore_index, ignore_index < tmax)
    do_rep = jnp.logical_and(jnp.logical_not(in_range),
                             jnp.any(tgt == ignore_index))
    t_di = jnp.where(jnp.logical_and(do_rep, tgt == ignore_index), tmin, tgt)
    sm = jax.nn.softmax(lg, axis=1)
    onehot_valid = jnp.logical_and(t_di >= 0, t_di < C)
    p_t = jnp.take_along_axis(sm, jnp.clip(t_di, 0, C - 1)[:, None], axis=1)[:, 0]
    inter = jnp.sum(jnp.where(onehot_valid, p_t, 0.0))
    osum = jnp.float32(lg.shape[0] * lg.shape[2] * lg.shape[3])
    tsum = jnp.sum(onehot_valid.astype(jnp.float32))
    dice = 1.0 - (2.0 * inter + smooth) / (osum + tsum + smooth)
    return ce + dice


if __name__ == "__main__":
    key = jax.random.PRNGKey(0)
    k1, k2 = jax.random.split(key)
    N, C, H, W = 2, 4, 16, 16
    logits = jax.random.normal(k1, (N, C, H, W), dtype=jnp.float32)
    target = jax.random.randint(k2, (N, H, W), 0, C, dtype=jnp.int32)
    # Exercise the ignore_index / dice-replacement path on a few pixels.
    target = target.at[0, 0, :3].set(IGNORE_INDEX)

    loss = jax.jit(ce_dice_loss)(logits, target)
    jax.block_until_ready(loss)

    ref = _reference_loss(logits, target, num_classes=C)
    lv, rv = float(loss), float(ref)
    if not (abs(lv - rv) <= 1e-3 * max(1.0, abs(rv))):
        raise SystemExit(f"MISMATCH: kernel={lv} ref={rv}")
    print("KERNEL_OK")
</pallas_src>

<mosaic_0001>
module attributes {stable_mosaic.version = 11 : i64} {
  func.func @_ce_dice_kernel(%arg0: i32, %arg1: i32, %arg2: i32, %arg3: memref<2xi32, #tpu.memory_space<smem>>, %arg4: memref<1x4x256xf32, #tpu.memory_space<vmem>>, %arg5: memref<1x1x256xi32, #tpu.memory_space<vmem>>, %arg6: memref<1x1x256xf32, #tpu.memory_space<vmem>>, %arg7: memref<1x1x256xf32, #tpu.memory_space<vmem>>) attributes {dimension_semantics = [#tpu.dimension_semantics<parallel>, #tpu.dimension_semantics<arbitrary>, #tpu.dimension_semantics<arbitrary>], iteration_bounds = array<i64: 1, 2, 1>, scalar_prefetch = 1 : i64, scratch_operands = 0 : i64, tpu.core_type = #tpu.core_type<tc>, window_params = [{transform_indices = @transform_0, window_bounds = array<i64: 1, 4, 256>}, {transform_indices = @transform_1, window_bounds = array<i64: 1, 1, 256>}, {transform_indices = @transform_2, window_bounds = array<i64: 1, 1, 256>}, {transform_indices = @transform_3, window_bounds = array<i64: 1, 1, 256>}]} {
    %c0_i32 = arith.constant 0 : i32
    %0 = arith.cmpi eq, %arg1, %c0_i32 : i32
    %c0_i32_0 = arith.constant 0 : i32
    %1 = arith.cmpi eq, %arg2, %c0_i32_0 : i32
    %2 = arith.andi %0, %1 : i1
    %3 = arith.extui %2 : i1 to i32
    %c0_i32_1 = arith.constant 0 : i32
    %4 = arith.cmpi ne, %3, %c0_i32_1 : i32
    scf.if %4 {
      %cst_31 = arith.constant 0.000000e+00 : f32
      %70 = vector.broadcast %cst_31 : f32 to vector<1x1x256xf32>
      %c0_32 = arith.constant 0 : index
      %c0_33 = arith.constant 0 : index
      %c0_34 = arith.constant 0 : index
      %71 = vector.load %arg6[%c0_32, %c0_33, %c0_34] : memref<1x1x256xf32, #tpu.memory_space<vmem>>, vector<1x1x256xf32>
      tpu.vector_store %arg6[%c0_32, %c0_33, %c0_34], %70 {strides = array<i32>} : memref<1x1x256xf32, #tpu.memory_space<vmem>>, vector<1x1x256xf32>,
      %cst_35 = arith.constant 0.000000e+00 : f32
      %72 = vector.broadcast %cst_35 : f32 to vector<1x1x256xf32>
      %c0_36 = arith.constant 0 : index
      %c0_37 = arith.constant 0 : index
      %c0_38 = arith.constant 0 : index
      %73 = vector.load %arg7[%c0_36, %c0_37, %c0_38] : memref<1x1x256xf32, #tpu.memory_space<vmem>>, vector<1x1x256xf32>
      tpu.vector_store %arg7[%c0_36, %c0_37, %c0_38], %72 {strides = array<i32>} : memref<1x1x256xf32, #tpu.memory_space<vmem>>, vector<1x1x256xf32>,
    } else {
    }
    %c1_i32 = arith.constant 1 : i32
    %5 = arith.muli %arg0, %c1_i32 : i32
    %6 = arith.addi %5, %arg2 : i32
    %c256_i32 = arith.constant 256 : i32
    %7 = arith.muli %6, %c256_i32 : i32
    %c0 = arith.constant 0 : index
    %c0_2 = arith.constant 0 : index
    %c0_3 = arith.constant 0 : index
    %8 = vector.load %arg4[%c0, %c0_2, %c0_3] : memref<1x4x256xf32, #tpu.memory_space<vmem>>, vector<1x4x256xf32>
    %9 = vector.shape_cast %8 : vector<1x4x256xf32> to vector<4x256xf32>
    %c0_4 = arith.constant 0 : index
    %c0_5 = arith.constant 0 : index
    %c0_6 = arith.constant 0 : index
    %10 = vector.load %arg5[%c0_4, %c0_5, %c0_6] : memref<1x1x256xi32, #tpu.memory_space<vmem>>, vector<1x1x256xi32>
    %11 = vector.shape_cast %10 : vector<1x1x256xi32> to vector<1x256xi32>
    %12 = tpu.iota {dimensions = array<i32: 1>} : vector<1x256xi32>
    %13 = vector.broadcast %7 : i32 to vector<1x256xi32>
    %14 = arith.addi %12, %13 : vector<1x256xi32>
    %c256_i32_7 = arith.constant 256 : i32
    %15 = vector.broadcast %c256_i32_7 : i32 to vector<1x256xi32>
    %16 = arith.cmpi slt, %14, %15 : vector<1x256xi32>
    %cst = arith.constant 0.000000e+00 : f32
    %17 = vector.shape_cast %16 : vector<1x256xi1> to vector<1x256xi1>
    %18 = vector.broadcast %17 : vector<1x256xi1> to vector<4x256xi1>
    %19 = vector.broadcast %cst : f32 to vector<4x256xf32>
    %20 = arith.select %18, %9, %19 : vector<4x256xi1>, vector<4x256xf32>
    %c0_8 = arith.constant 0 : index
    %21 = memref.load %arg3[%c0_8] : memref<2xi32, #tpu.memory_space<smem>>
    %c1 = arith.constant 1 : index
    %22 = memref.load %arg3[%c1] : memref<2xi32, #tpu.memory_space<smem>>
    %c255_i32 = arith.constant 255 : i32
    %23 = vector.broadcast %c255_i32 : i32 to vector<1x256xi32>
    %24 = arith.cmpi eq, %11, %23 : vector<1x256xi32>
    %c0_i32_9 = arith.constant 0 : i32
    %25 = arith.cmpi ne, %21, %c0_i32_9 : i32
    %26 = vector.broadcast %25 : i1 to vector<1x256xi1>
    %27 = arith.andi %26, %24 : vector<1x256xi1>
    %28 = vector.broadcast %22 : i32 to vector<1x256xi32>
    %29 = arith.select %27, %28, %11 : vector<1x256xi1>, vector<1x256xi32>
    %cst_10 = arith.constant dense<0xFF800000> : vector<256xf32>
    %30 = vector.multi_reduction <maximumf>, %20, %cst_10 [0] : vector<4x256xf32> to vector<256xf32>
    %31 = vector.shape_cast %30 : vector<256xf32> to vector<1x256xf32>
    %32 = vector.broadcast %31 : vector<1x256xf32> to vector<4x256xf32>
    %33 = arith.subf %20, %32 : vector<4x256xf32>
    %34 = math.exp %33 : vector<4x256xf32>
    %cst_11 = arith.constant dense<0.000000e+00> : vector<256xf32>
    %35 = vector.multi_reduction <add>, %34, %cst_11 [0] : vector<4x256xf32> to vector<256xf32>
    %36 = vector.shape_cast %35 : vector<256xf32> to vector<1x256xf32>
    %37 = math.log %36 : vector<1x256xf32>
    %38 = tpu.iota {dimensions = array<i32: 0>} : vector<4x256xi32>
    %39 = vector.broadcast %29 : vector<1x256xi32> to vector<4x256xi32>
    %40 = arith.cmpi eq, %38, %39 : vector<4x256xi32>
    %cst_12 = arith.constant 0.000000e+00 : f32
    %41 = vector.broadcast %cst_12 : f32 to vector<4x256xf32>
    %42 = arith.select %40, %20, %41 : vector<4x256xi1>, vector<4x256xf32>
    %cst_13 = arith.constant dense<0.000000e+00> : vector<256xf32>
    %43 = vector.multi_reduction <add>, %42, %cst_13 [0] : vector<4x256xf32> to vector<256xf32>
    %44 = vector.shape_cast %43 : vector<256xf32> to vector<1x256xf32>
    %45 = arith.addf %37, %31 : vector<1x256xf32>
    %46 = arith.subf %45, %44 : vector<1x256xf32>
    %cst_14 = arith.constant dense<true> : vector<1x256xi1>
    %47 = arith.xori %24, %cst_14 : vector<1x256xi1>
    %48 = arith.andi %16, %47 : vector<1x256xi1>
    %cst_15 = arith.constant 0.000000e+00 : f32
    %49 = vector.broadcast %cst_15 : f32 to vector<1x256xf32>
    %50 = arith.select %48, %46, %49 : vector<1x256xi1>, vector<1x256xf32>
    %c0_i32_16 = arith.constant 0 : i32
    %51 = vector.broadcast %c0_i32_16 : i32 to vector<1x256xi32>
    %52 = arith.cmpi sge, %29, %51 : vector<1x256xi32>
    %c4_i32 = arith.constant 4 : i32
    %53 = vector.broadcast %c4_i32 : i32 to vector<1x256xi32>
    %54 = arith.cmpi slt, %29, %53 : vector<1x256xi32>
    %55 = arith.andi %52, %54 : vector<1x256xi1>
    %56 = arith.andi %16, %55 : vector<1x256xi1>
    %cst_17 = arith.constant 0.000000e+00 : f32
    %57 = vector.broadcast %cst_17 : f32 to vector<1x256xf32>
    %58 = arith.subf %57, %46 : vector<1x256xf32>
    %59 = math.exp %58 : vector<1x256xf32>
    %cst_18 = arith.constant 0.000000e+00 : f32
    %60 = vector.broadcast %cst_18 : f32 to vector<1x256xf32>
    %61 = arith.select %56, %59, %60 : vector<1x256xi1>, vector<1x256xf32>
    %c0_19 = arith.constant 0 : index
    %c0_20 = arith.constant 0 : index
    %c0_21 = arith.constant 0 : index
    %62 = vector.load %arg6[%c0_19, %c0_20, %c0_21] : memref<1x1x256xf32, #tpu.memory_space<vmem>>, vector<1x1x256xf32>
    %63 = vector.shape_cast %50 : vector<1x256xf32> to vector<1x1x256xf32>
    %64 = arith.addf %62, %63 : vector<1x1x256xf32>
    %c0_22 = arith.constant 0 : index
    %c0_23 = arith.constant 0 : index
    %c0_24 = arith.constant 0 : index
    %65 = vector.load %arg6[%c0_22, %c0_23, %c0_24] : memref<1x1x256xf32, #tpu.memory_space<vmem>>, vector<1x1x256xf32>
    tpu.vector_store %arg6[%c0_22, %c0_23, %c0_24], %64 {strides = array<i32>} : memref<1x1x256xf32, #tpu.memory_space<vmem>>, vector<1x1x256xf32>,
    %c0_25 = arith.constant 0 : index
    %c0_26 = arith.constant 0 : index
    %c0_27 = arith.constant 0 : index
    %66 = vector.load %arg7[%c0_25, %c0_26, %c0_27] : memref<1x1x256xf32, #tpu.memory_space<vmem>>, vector<1x1x256xf32>
    %67 = vector.shape_cast %61 : vector<1x256xf32> to vector<1x1x256xf32>
    %68 = arith.addf %66, %67 : vector<1x1x256xf32>
    %c0_28 = arith.constant 0 : index
    %c0_29 = arith.constant 0 : index
    %c0_30 = arith.constant 0 : index
    %69 = vector.load %arg7[%c0_28, %c0_29, %c0_30] : memref<1x1x256xf32, #tpu.memory_space<vmem>>, vector<1x1x256xf32>
    tpu.vector_store %arg7[%c0_28, %c0_29, %c0_30], %68 {strides = array<i32>} : memref<1x1x256xf32, #tpu.memory_space<vmem>>, vector<1x1x256xf32>,
    return
  }
  func.func @transform_0(%arg0: i32, %arg1: i32, %arg2: i32, %arg3: memref<2xi32, #tpu.memory_space<smem>>) -> (i32, i32, i32) {
    %c1_i32 = arith.constant 1 : i32
    %0 = arith.muli %arg0, %c1_i32 : i32
    %1 = arith.addi %0, %arg2 : i32
    %c0_i32 = arith.constant 0 : i32
    %2 = arith.minsi %1, %c0_i32 : i32
    %c0_i32_0 = arith.constant 0 : i32
    %c0_i32_1 = arith.constant 0 : i32
    return %arg1, %c0_i32_0, %2 : i32, i32, i32
  }
  func.func @transform_1(%arg0: i32, %arg1: i32, %arg2: i32, %arg3: memref<2xi32, #tpu.memory_space<smem>>) -> (i32, i32, i32) {
    %c1_i32 = arith.constant 1 : i32
    %0 = arith.muli %arg0, %c1_i32 : i32
    %1 = arith.addi %0, %arg2 : i32
    %c0_i32 = arith.constant 0 : i32
    %2 = arith.minsi %1, %c0_i32 : i32
    %c0_i32_0 = arith.constant 0 : i32
    %c0_i32_1 = arith.constant 0 : i32
    return %arg1, %c0_i32_0, %2 : i32, i32, i32
  }
  func.func @transform_2(%arg0: i32, %arg1: i32, %arg2: i32, %arg3: memref<2xi32, #tpu.memory_space<smem>>) -> (i32, i32, i32) {
    %c0_i32 = arith.constant 0 : i32
    %c0_i32_0 = arith.constant 0 : i32
    %c0_i32_1 = arith.constant 0 : i32
    return %arg0, %c0_i32, %c0_i32_0 : i32, i32, i32
  }
  func.func @transform_3(%arg0: i32, %arg1: i32, %arg2: i32, %arg3: memref<2xi32, #tpu.memory_space<smem>>) -> (i32, i32, i32) {
    %c0_i32 = arith.constant 0 : i32
    %c0_i32_0 = arith.constant 0 : i32
    %c0_i32_1 = arith.constant 0 : i32
    return %arg0, %c0_i32, %c0_i32_0 : i32, i32, i32
  }
}

</mosaic_0001>

<llo_original>
// kernel: ce_dice_loss.1
$region0: #{ce_dice_loss.1}
  #allocation0 [shape = 'u32[]', space=smem, size = 0x4, offset = 0x4, fixed_abs, tag = 'smem constant byte address 0x4 - core index']
  #allocation1 [shape = 'u32[72,128]{1,0:T(1,128)}', space=vmem, size = 0x9000, scoped, tag = 'internal scratch']
  #allocation2 [shape = 's32[1]{0}', space=sflag, size = 0x4, scoped, tag = 'scoped memory for ce_dice_loss.1']
  #allocation3 [shape = 'u8[512]{0}', space=smem, size = 0x200, scoped, tag = 'prefetched SMEM operand 0']
  %s0 = inlined_call_operand.vmem [shape: s32[2], index: 0, kind: input, shape index: {}]
  %s1 = inlined_call_operand.vmem [shape: f32[2,4,256], index: 1, kind: input, shape index: {}]
  %s2 = inlined_call_operand.vmem [shape: s32[2,1,256], index: 2, kind: input, shape index: {}]
  %s3 = inlined_call_operand.vmem [shape: f32[1,1,256], index: 3, kind: output, shape index: {0}]
  %s4 = inlined_call_operand.vmem [shape: f32[1,1,256], index: 4, kind: output, shape index: {1}]
  %5 = xla_tuple %s3, %s4
  %s6 = sld [smem:[#allocation0]]
  $region53: #{ce_dice_loss.1} parent=0
    _
  %s8 = ssub.s32 1, %s6
  %s9 = scalar_select 0, %s8, %s6
  %s11 = sshll.u32 %s0, 4
  %s12 = int_to_ptr.vmem [resolvable:$true] %s11
  %14 = dma.vmem_to_smem %s12, 16, [#allocation3], [#allocation2]
  %16 = dma.done [#allocation2], 16
  %17 = sfence
  loop: start=0, step=1, limit=4
  $region2: #{ce_dice_loss.1} parent=0 // loop_pre_header
    _
  $region3: #{ce_dice_loss.1} parent=0 // loop_header
    %s19 = sphi 0, %s23
    %p20 = scmp.ge.s32.totalorder %s19, 4
    %s26 = sphi 0, %s45
    %s27 = sphi 0, %s41
    %s28 = sphi 0, %s37
    %s29 = sphi 0, %s26
    %s30 = sphi 0, %s27
    %s31 = sphi 0, %s28
    %s32 = sphi 0, %s29
    %s33 = sphi 0, %s30
    %s34 = sphi 0, %s31
    %s56 = sphi 0, %s58
    %s59 = sphi 0, %s56
    %s60 = sphi 0, %s59
    %s76 = sphi 0, %s60
    %s90 = sphi 0, %s92
    %s93 = sphi 0, %s90
    %s94 = sphi 0, %s93
    %s110 = sphi 0, %s94
    %s116 = sphi 0, %s118
    %s119 = sphi 0, %s116
    %s120 = sphi 0, %s119
    %s136 = sphi 0, %s120
    %s142 = sphi 0, %s144
    %s145 = sphi 0, %s142
    %s146 = sphi 0, %s145
    %s162 = sphi 0, %s146
  $region4: #{ce_dice_loss.1} parent=0 // loop_header_branch
    %22 = sbr.rel (%p20) target = $region8
  $region5: #{ce_dice_loss.1} parent=0 // loop_body
    %s24 = ssub.s32 %s19, 1
    %s25 = ssub.s32 %s19, 2
    %s35 = sadd.s32 1, %s28
    %p36 = scmp.ge.s32.totalorder %s35, 1
    %s37 = scalar_select %p36, 0, %s35
    %s38 = sadd.s32 1, %s27
    %s39 = scalar_select %p36, %s38, %s27
    %p40 = scmp.ge.s32.totalorder %s39, 2
    %s41 = scalar_select %p40, 0, %s39
    %s42 = sadd.s32 1, %s26
    %s43 = scalar_select %p40, %s42, %s26
    %p44 = scmp.ge.s32.totalorder %s43, 1
    %s45 = scalar_select %p44, 0, %s43
    %s46 = sadd.s32 %s26, %s28
    %p47 = scmp.lt.s32.totalorder %s46, 0
    %s48 = scalar_select %p47, %s46, 0
    %s49 = sadd.s32 %s45, %s37
    %p50 = scmp.lt.s32.totalorder %s49, 0
    %s51 = scalar_select %p50, %s49, 0
    %s52 = ssub.s32 %s27, %s41
    %s53 = ssub.s32 %s48, %s51
    %s54 = sor.u32 %s52, %s53
    %p55 = scmp.eq.s32.totalorder %s54, 0
    %s57 = sadd.s32 %s56, 1
    %s58 = scalar_select %p55, %s56, %s57
    %p61 = pneg %p55
    %p62 = scmp.eq.s32.totalorder %s19, 1
    %p63 = por %p61, %p62
    %p64 = scmp.ne.s32.totalorder %s56, %s59
    %p65 = scmp.eq.s32.totalorder %s19, 0
    %p66 = por %p64, %p65
    %p67 = scmp.ne.s32.totalorder %s56, %s59
    %p68 = scmp.eq.s32.totalorder %s24, 1
    %p69 = por %p67, %p68
    %p70 = scmp.ne.s32.totalorder %s59, %s60
    %p71 = scmp.eq.s32.totalorder %s24, 0
    %p72 = por %p70, %p71
    %p73 = scmp.ne.s32.totalorder %s59, %s60
    %p74 = scmp.eq.s32.totalorder %s25, 1
    %p75 = por %p73, %p74
    %p77 = scmp.ne.s32.totalorder %s60, %s76
    %p78 = scmp.eq.s32.totalorder %s25, 0
    %p79 = por %p77, %p78
    %s80 = sadd.s32 %s26, %s28
    %p81 = scmp.lt.s32.totalorder %s80, 0
    %s82 = scalar_select %p81, %s80, 0
    %s83 = sadd.s32 %s45, %s37
    %p84 = scmp.lt.s32.totalorder %s83, 0
    %s85 = scalar_select %p84, %s83, 0
    %s86 = ssub.s32 %s27, %s41
    %s87 = ssub.s32 %s82, %s85
    %s88 = sor.u32 %s86, %s87
    %p89 = scmp.eq.s32.totalorder %s88, 0
    %s91 = sadd.s32 %s90, 1
    %s92 = scalar_select %p89, %s90, %s91
    %p95 = pneg %p89
    %p96 = scmp.eq.s32.totalorder %s19, 1
    %p97 = por %p95, %p96
    %p98 = scmp.ne.s32.totalorder %s90, %s93
    %p99 = scmp.eq.s32.totalorder %s19, 0
    %p100 = por %p98, %p99
    %p101 = scmp.ne.s32.totalorder %s90, %s93
    %p102 = scmp.eq.s32.totalorder %s24, 1
    %p103 = por %p101, %p102
    %p104 = scmp.ne.s32.totalorder %s93, %s94
    %p105 = scmp.eq.s32.totalorder %s24, 0
    %p106 = por %p104, %p105
    %p107 = scmp.ne.s32.totalorder %s93, %s94
    %p108 = scmp.eq.s32.totalorder %s25, 1
    %p109 = por %p107, %p108
    %p111 = scmp.ne.s32.totalorder %s94, %s110
    %p112 = scmp.eq.s32.totalorder %s25, 0
    %p113 = por %p111, %p112
    %s114 = ssub.s32 %s26, %s45
    %p115 = scmp.eq.s32.totalorder %s114, 0
    %s117 = sadd.s32 %s116, 1
    %s118 = scalar_select %p115, %s116, %s117
    %p121 = pneg %p115
    %p122 = scmp.eq.s32.totalorder %s19, 1
    %p123 = por %p121, %p122
    %p124 = scmp.ne.s32.totalorder %s116, %s119
    %p125 = scmp.eq.s32.totalorder %s19, 0
    %p126 = por %p124, %p125
    %p127 = scmp.ne.s32.totalorder %s116, %s119
    %p128 = scmp.eq.s32.totalorder %s24, 1
    %p129 = por %p127, %p128
    %p130 = scmp.ne.s32.totalorder %s119, %s120
    %p131 = scmp.eq.s32.totalorder %s24, 0
    %p132 = por %p130, %p131
    %p133 = scmp.ne.s32.totalorder %s119, %s120
    %p134 = scmp.eq.s32.totalorder %s25, 1
    %p135 = por %p133, %p134
    %p137 = scmp.ne.s32.totalorder %s120, %s136
    %p138 = scmp.eq.s32.totalorder %s25, 0
    %p139 = por %p137, %p138
    %s140 = ssub.s32 %s26, %s45
    %p141 = scmp.eq.s32.totalorder %s140, 0
    %s143 = sadd.s32 %s142, 1
    %s144 = scalar_select %p141, %s142, %s143
    %p147 = pneg %p141
    %p148 = scmp.eq.s32.totalorder %s19, 1
    %p149 = por %p147, %p148
    %p150 = scmp.ne.s32.totalorder %s142, %s145
    %p151 = scmp.eq.s32.totalorder %s19, 0
    %p152 = por %p150, %p151
    %p153 = scmp.ne.s32.totalorder %s142, %s145
    %p154 = scmp.eq.s32.totalorder %s24, 1
    %p155 = por %p153, %p154
    %p156 = scmp.ne.s32.totalorder %s145, %s146
    %p157 = scmp.eq.s32.totalorder %s24, 0
    %p158 = por %p156, %p157
    %p159 = scmp.ne.s32.totalorder %s145, %s146
    %p160 = scmp.eq.s32.totalorder %s25, 1
    %p161 = por %p159, %p160
    %p163 = scmp.ne.s32.totalorder %s146, %s162
    %p164 = scmp.eq.s32.totalorder %s25, 0
    %p165 = por %p163, %p164
    %p166 = scmp.le.s32.totalorder 1, %s19
    %p167 = scmp.lt.s32.totalorder %s19, 3
    %p168 = pnand %p166, %p167
    %p169 = pneg %p168
    // Predicated region
    $region9: #{ce_dice_loss.1} parent=5 // pred_check
      _
    $region10: #{ce_dice_loss.1} parent=5 // pred_check_branch
      %171 = sbr.rel (%p168) target = $region12
    $region11: #{ce_dice_loss.1} parent=5 // pred_region
      %s172 = ssub.s32 %s19, 1
    $region12: #{ce_dice_loss.1} parent=5 // pred_fallthru
      _
    %p173 = scmp.lt.s32.totalorder %s19, 2
    // Predicated region
    $region13: #{ce_dice_loss.1} parent=5 // pred_check
      %p174 = pneg %p173
    $region14: #{ce_dice_loss.1} parent=5 // pred_check_branch
      %176 = sbr.rel (%p174) target = $region16
    $region15: #{ce_dice_loss.1} parent=5 // pred_region
      // Predicated region
      $region17: #{ce_dice_loss.1} parent=15 // pred_check
        %p177 = pneg %p66
      $region18: #{ce_dice_loss.1} parent=15 // pred_check_branch
        %179 = sbr.rel (%p177) target = $region20
      $region19: #{ce_dice_loss.1} parent=15 // pred_region
        %s180 = sadd.s32 %s26, %s28
        %p181 = scmp.lt.s32.totalorder %s180, 0
        %s182 = scalar_select %p181, %s180, 0
        %s183 = smul.u32 2, %s182
        %p184 = scmp.lt.s32.totalorder %s27, 1
        %s185 = scalar_select %p184, %s27, 1
        %p186 = scmp.lt.s32.totalorder %s183, 1
        %s187 = scalar_select %p186, %s183, 1
        %s188 = smul.addr %s185, 2
        %s189 = sadd.s32 %s187, %s188
        %s190 = smul.addr %s189, 4
        %s191 = scalar_lea.vmem %s1, %s190
        %s192 = sadd.s32 %s26, %s28
        %p193 = scmp.lt.s32.totalorder %s192, 0
        %s194 = scalar_select %p193, %s192, 0
        %s195 = smul.u32 2, %s194
      $region20: #{ce_dice_loss.1} parent=15 // pred_fallthru
        _
      // Predicated region
      $region21: #{ce_dice_loss.1} parent=15 // pred_check
        %p196 = pneg %p100
      $region22: #{ce_dice_loss.1} parent=15 // pred_check_branch
        %198 = sbr.rel (%p196) target = $region24
      $region23: #{ce_dice_loss.1} parent=15 // pred_region
        %s199 = sadd.s32 %s26, %s28
        %p200 = scmp.lt.s32.totalorder %s199, 0
        %s201 = scalar_select %p200, %s199, 0
        %s202 = smul.u32 2, %s201
        %p203 = scmp.lt.s32.totalorder %s27, 1
        %s204 = scalar_select %p203, %s27, 1
        %p205 = scmp.lt.s32.totalorder %s202, 1
        %s206 = scalar_select %p205, %s202, 1
        %s207 = smul.addr %s204, 2
        %s208 = sadd.s32 %s206, %s207
        %s209 = scalar_lea.vmem %s2, %s208
        %s210 = sadd.s32 %s26, %s28
        %p211 = scmp.lt.s32.totalorder %s210, 0
        %s212 = scalar_select %p211, %s210, 0
        %s213 = smul.u32 2, %s212
      $region24: #{ce_dice_loss.1} parent=15 // pred_fallthru
        _
    $region16: #{ce_dice_loss.1} parent=5 // pred_fallthru
      _
    %p214 = scmp.le.s32.totalorder 1, %s19
    %p215 = scmp.lt.s32.totalorder %s19, 3
    %p216 = pnand %p214, %p215
    %p217 = pneg %p216
    // Predicated region
    $region25: #{ce_dice_loss.1} parent=5 // pred_check
      _
    $region26: #{ce_dice_loss.1} parent=5 // pred_check_branch
      %219 = sbr.rel (%p216) target = $region28
    $region27: #{ce_dice_loss.1} parent=5 // pred_region
      %s220 = ssub.s32 %s19, 1
      %s221 = sadd.s32 %s29, %s31
      %p222 = scmp.lt.s32.totalorder %s221, 0
      %s223 = scalar_select %p222, %s221, 0
      %s224 = smul.u32 2, %s223
      %p225 = scmp.lt.s32.totalorder %s30, 1
      %s226 = scalar_select %p225, %s30, 1
      %p227 = scmp.lt.s32.totalorder %s224, 1
      %s228 = scalar_select %p227, %s224, 1
      %s229 = smul.addr %s226, 2
      %s230 = sadd.s32 %s228, %s229
      %s231 = smul.addr %s230, 4
      %s232 = scalar_lea.vmem %s1, %s231
      %p233 = pneg %p72
      %p234 = pneg %p69
      %s235 = sadd.s32 %s29, %s31
      %p236 = scmp.lt.s32.totalorder %s235, 0
      %s237 = scalar_select %p236, %s235, 0
      %s238 = smul.u32 2, %s237
      %p239 = scmp.lt.s32.totalorder %s30, 1
      %s240 = scalar_select %p239, %s30, 1
      %p241 = scmp.lt.s32.totalorder %s238, 1
      %s242 = scalar_select %p241, %s238, 1
      %s243 = smul.addr %s240, 2
      %s244 = sadd.s32 %s242, %s243
      %s245 = scalar_lea.vmem %s2, %s244
      %p246 = pneg %p106
      %p247 = pneg %p103
      %p248 = pneg %p132
      %p249 = pneg %p129
      %p250 = scmp.lt.s32.totalorder %s29, 0
      %s251 = scalar_select %p250, %s29, 0
      %s252 = smul.addr %s251, 2
      %s253 = scalar_lea.vmem %s3, %s252
      %p254 = pneg %p158
      %p255 = pneg %p155
      %p256 = scmp.lt.s32.totalorder %s29, 0
      %s257 = scalar_select %p256, %s29, 0
      %s258 = smul.addr %s257, 2
      %s259 = scalar_lea.vmem %s4, %s258
      %s260 = sadd.s32 %s29, %s31
      %p261 = scmp.lt.s32.totalorder %s260, 0
      %s262 = scalar_select %p261, %s260, 0
      %s263 = smul.u32 2, %s262
      %p264 = scmp.lt.s32.totalorder %s30, 1
      %s265 = scalar_select %p264, %s30, 1
      %p266 = scmp.lt.s32.totalorder %s263, 1
      %s267 = scalar_select %p266, %s263, 1
      %s268 = smul.addr %s265, 2
      %s269 = sadd.s32 %s267, %s268
      %s270 = smul.addr %s269, 4
      %s271 = scalar_lea.vmem %s1, %s270
      %s272 = sadd.s32 %s29, %s31
      %p273 = scmp.lt.s32.totalorder %s272, 0
      %s274 = scalar_select %p273, %s272, 0
      %s275 = smul.u32 2, %s274
      %s276 = sadd.s32 %s29, %s31
      %p277 = scmp.lt.s32.totalorder %s276, 0
      %s278 = scalar_select %p277, %s276, 0
      %s279 = smul.u32 2, %s278
      %p280 = scmp.lt.s32.totalorder %s30, 1
      %s281 = scalar_select %p280, %s30, 1
      %p282 = scmp.lt.s32.totalorder %s279, 1
      %s283 = scalar_select %p282, %s279, 1
      %s284 = smul.addr %s281, 2
      %s285 = sadd.s32 %s283, %s284
      %s286 = scalar_lea.vmem %s2, %s285
      %s287 = sadd.s32 %s29, %s31
      %p288 = scmp.lt.s32.totalorder %s287, 0
      %s289 = scalar_select %p288, %s287, 0
      %s290 = smul.u32 2, %s289
      %p291 = scmp.lt.s32.totalorder %s29, 0
      %s292 = scalar_select %p291, %s29, 0
      %s293 = smul.addr %s292, 2
      %s294 = scalar_lea.vmem %s3, %s293
      %p295 = scmp.lt.s32.totalorder %s29, 0
      %s296 = scalar_select %p295, %s29, 0
      %s297 = smul.addr %s296, 2
      %s298 = scalar_lea.vmem %s4, %s297
      %p299 = scmp.eq.s32.totalorder %s30, 0
      %p300 = scmp.eq.s32.totalorder %s31, 0
      %p301 = pnand %p299, %p300
      %p302 = pneg %p301
      // Predicated region
      $region29: #{ce_dice_loss.1} parent=27 // pred_check
        _
      $region30: #{ce_dice_loss.1} parent=27 // pred_check_branch
        %304 = sbr.rel (%p301) target = $region32
      $region31: #{ce_dice_loss.1} parent=27 // pred_region
        %v305 = vlaneseq
        %vm306 = vcmp.ge.s32.totalorder %v305, 0
        %vm307 = vcmp.lt.s32.totalorder %v305, 256
        %vm308 = vmand %vm306, %vm307
        %309 = vst.msk [vmem:[%s294] sm:$0x3] %vm308, 0.0
        %310 = vst.msk [vmem:[%s298] sm:$0x3] %vm308, 0.0
      $region32: #{ce_dice_loss.1} parent=27 // pred_fallthru
        _
      %s311 = sadd.s32 %s29, %s31
      %s312 = smul.u32 %s311, 256
      %v313 = vld [vmem:[%s271] sm:$0xff]
      %v314 = vld [vmem:[%s286] sm:$0x3]
      %v315 = vlaneseq
      %v316 = vand.u32 %v315, 127
      %v317 = vadd.s32 %v316, 128
      %v318 = vstv %s312
      %v319 = vadd.s32 %v316, %v318
      %v320 = vadd.s32 %v317, %v318
      %vm321 = vcmp.lt.s32.totalorder %v319, 256
      %vm322 = vcmp.lt.s32.totalorder %v320, 256
      %v323 = vsel %vm321, 1, 0
      %v324 = vsel %vm322, 1, 0
      %vm325 = vcmp.eq.s32.totalorder %v323, 1
      %vm326 = vcmp.eq.s32.totalorder %v324, 1
      %328 = vst [vmem:[#allocation1] ss:$2 sm:$0xff] %v313
      %v329 = vld.sshfl [vmem:[#allocation1] sm:$0xff pattern:$0x75316420]
      %v330 = vld.sshfl [vmem:[#allocation1 + $0x8] sm:$0xff pattern:$0x75316420]
      %v333 = vsel %vm325, %v329, 0.0
      %v334 = vsel %vm326, %v330, 0.0
      %s335 = sld [smem:[#allocation3]]
      %s336 = sld [smem:[#allocation3 + $0x1]]
      %vm337 = vcmp.eq.s32.totalorder %v314, 255
      %p338 = scmp.ne.s32.totalorder %s335, 0
      %s339 = scalar_select %p338, 1, 0
      %v340 = vstv %s339
      %vm341 = vcmp.eq.s32.totalorder %v340, 1
      %vm342 = vmand %vm341, %vm337
      %v343 = vstv %s336
      %v344 = vsel %vm342, %v343, %v314
      %vm345 = vcmask 1043456
      %v346 = vsel %vm345, %v333, -inf
      %v347 = vrot.slane %v346, 4
      %v348 = vmax.f32 %v346, %v347
      %v349 = vrot.slane %v348, 2
      %v350 = vmax.f32 %v348, %v349
      %v351 = vrot.slane %v350, 1
      %v352 = vmax.f32 %v350, %v351
      %v353 = vsel %vm345, %v334, -inf
      %v354 = vrot.slane %v353, 4
      %v355 = vmax.f32 %v353, %v354
      %v356 = vrot.slane %v355, 2
      %v357 = vmax.f32 %v355, %v356
      %v358 = vrot.slane %v357, 1
      %v359 = vmax.f32 %v357, %v358
      %v360 = vsub.f32 %v333, %v352
      %v361 = vsub.f32 %v334, %v359
      %v362 = vmul.f32 %v360, 1.442695
      %v363 = vpow.pop %v362
      %v364 = vmul.f32 %v361, 1.442695
      %v365 = vpow.pop %v364
      %v366 = vsel %vm345, %v363, 0.0
      %v367 = vrot.slane %v366, 4
      %v368 = vadd.f32 %v366, %v367
      %v369 = vrot.slane %v368, 2
      %v370 = vadd.f32 %v368, %v369
      %v371 = vrot.slane %v370, 1
      %v372 = vadd.f32 %v370, %v371
      %v373 = vsel %vm345, %v365, 0.0
      %v374 = vrot.slane %v373, 4
      %v375 = vadd.f32 %v373, %v374
      %v376 = vrot.slane %v375, 2
      %v377 = vadd.f32 %v375, %v376
      %v378 = vrot.slane %v377, 1
      %v379 = vadd.f32 %v377, %v378
      %v380 = vlog2.pop %v372
      %v381 = vmul.f32 %v380, 0.6931472
      %v382 = vlog2.pop %v379
      %v383 = vmul.f32 %v382, 0.6931472
      %v384 = vlaneseq
      %v385 = vshrl.u32 %v384, 7
      %v386 = vperm.slane %v344, 0
      %v387 = vperm.slane %v344, 1
      %vm388 = vcmp.eq.s32.totalorder %v385, %v386
      %vm389 = vcmp.eq.s32.totalorder %v385, %v387
      %v390 = vsel %vm388, %v333, 0.0
      %v391 = vsel %vm389, %v334, 0.0
      %v392 = vsel %vm345, %v390, 0.0
      %v393 = vrot.slane %v392, 4
      %v394 = vadd.f32 %v392, %v393
      %v395 = vrot.slane %v394, 2
      %v396 = vadd.f32 %v394, %v395
      %v397 = vrot.slane %v396, 1
      %v398 = vadd.f32 %v396, %v397
      %v399 = vsel %vm345, %v391, 0.0
      %v400 = vrot.slane %v399, 4
      %v401 = vadd.f32 %v399, %v400
      %v402 = vrot.slane %v401, 2
      %v403 = vadd.f32 %v401, %v402
      %v404 = vrot.slane %v403, 1
      %v405 = vadd.f32 %v403, %v404
      %v406 = vadd.f32 %v381, %v352
      %v407 = vadd.f32 %v383, %v359
      %v408 = vsub.f32 %v406, %v398
      %v409 = vsub.f32 %v407, %v405
      %vm410 = vmxor %vm337, 1
      %v411 = vsel %vm410, 1, 0
      %v412 = vperm.slane %v411, 0
      %v413 = vperm.slane %v411, 1
      %vm414 = vcmp.ne.s32.totalorder %v412, 0
      %vm415 = vcmp.ne.s32.totalorder %v413, 0
      %vm416 = vmand %vm321, %vm414
      %vm417 = vmand %vm322, %vm415
      %v418 = vsel %vm416, %v408, 0.0
      %v419 = vsel %vm417, %v409, 0.0
      %vm420 = vcmp.ge.s32.totalorder %v344, 0
      %vm421 = vcmp.lt.s32.totalorder %v344, 4
      %vm422 = vmand %vm420, %vm421
      %v423 = vsel %vm422, 1, 0
      %v424 = vperm.slane %v423, 0
      %v425 = vperm.slane %v423, 1
      %vm426 = vcmp.ne.s32.totalorder %v424, 0
      %vm427 = vcmp.ne.s32.totalorder %v425, 0
      %vm428 = vmand %vm321, %vm426
      %vm429 = vmand %vm322, %vm427
      %v430 = vsub.f32 0.0, %v408
      %v431 = vsub.f32 0.0, %v409
      %v432 = vmul.f32 %v430, 1.442695
      %v433 = vpow.pop %v432
      %v434 = vmul.f32 %v431, 1.442695
      %v435 = vpow.pop %v434
      %v436 = vsel %vm428, %v433, 0.0
      %v437 = vsel %vm429, %v435, 0.0
      %v438 = vld [vmem:[%s294] sm:$0x3]
      %v441 = vrot.slane %v419, 7
      %vm442 = vcmask 1040384
      %v443 = vsel %vm442, %v418, %v441
      %v445 = vadd.f32 %v438, %v443
      %v446 = vlaneseq
      %vm447 = vcmp.ge.s32.totalorder %v446, 0
      %vm448 = vcmp.lt.s32.totalorder %v446, 256
      %vm449 = vmand %vm447, %vm448
      %450 = vst.msk [vmem:[%s294] sm:$0x3] %vm449, %v445
      %v451 = vld [vmem:[%s298] sm:$0x3]
      %v454 = vrot.slane %v437, 7
      %v455 = vsel %vm442, %v436, %v454
      %v457 = vadd.f32 %v451, %v455
      %458 = vst.msk [vmem:[%s298] sm:$0x3] %vm449, %v457
      %p459 = scmp.lt.s32.totalorder %s29, 0
      %s460 = scalar_select %p459, %s29, 0
      %s461 = smul.addr %s460, 2
      %s462 = scalar_lea.vmem %s3, %s461
      %p463 = scmp.lt.s32.totalorder %s29, 0
      %s464 = scalar_select %p463, %s29, 0
      %s465 = smul.addr %s464, 2
      %s466 = scalar_lea.vmem %s4, %s465
      // Predicated region
      $region33: #{ce_dice_loss.1} parent=27 // pred_check
        %p467 = pneg %p129
      $region34: #{ce_dice_loss.1} parent=27 // pred_check_branch
        %469 = sbr.rel (%p467) target = $region36
      $region35: #{ce_dice_loss.1} parent=27 // pred_region
        _
      $region36: #{ce_dice_loss.1} parent=27 // pred_fallthru
        _
      // Predicated region
      $region37: #{ce_dice_loss.1} parent=27 // pred_check
        %p470 = pneg %p155
      $region38: #{ce_dice_loss.1} parent=27 // pred_check_branch
        %472 = sbr.rel (%p470) target = $region40
      $region39: #{ce_dice_loss.1} parent=27 // pred_region
        _
      $region40: #{ce_dice_loss.1} parent=27 // pred_fallthru
        _
      // Predicated region
      $region41: #{ce_dice_loss.1} parent=27 // pred_check
        %p473 = pneg %p129
      $region42: #{ce_dice_loss.1} parent=27 // pred_check_branch
        %475 = sbr.rel (%p473) target = $region44
      $region43: #{ce_dice_loss.1} parent=27 // pred_region
        %p476 = scmp.lt.s32.totalorder %s29, 0
        %s477 = scalar_select %p476, %s29, 0
        %s478 = smul.addr %s477, 2
        %s479 = scalar_lea.vmem %s3, %s478
      $region44: #{ce_dice_loss.1} parent=27 // pred_fallthru
        _
      // Predicated region
      $region45: #{ce_dice_loss.1} parent=27 // pred_check
        %p480 = pneg %p155
      $region46: #{ce_dice_loss.1} parent=27 // pred_check_branch
        %482 = sbr.rel (%p480) target = $region48
      $region47: #{ce_dice_loss.1} parent=27 // pred_region
        %p483 = scmp.lt.s32.totalorder %s29, 0
        %s484 = scalar_select %p483, %s29, 0
        %s485 = smul.addr %s484, 2
        %s486 = scalar_lea.vmem %s4, %s485
      $region48: #{ce_dice_loss.1} parent=27 // pred_fallthru
        _
    $region28: #{ce_dice_loss.1} parent=5 // pred_fallthru
      _
    %p487 = scmp.le.s32.totalorder 2, %s19
    // Predicated region
    $region49: #{ce_dice_loss.1} parent=5 // pred_check
      %p488 = pneg %p487
    $region50: #{ce_dice_loss.1} parent=5 // pred_check_branch
      %490 = sbr.rel (%p488) target = $region52
    $region51: #{ce_dice_loss.1} parent=5 // pred_region
      %s491 = ssub.s32 %s19, 2
    $region52: #{ce_dice_loss.1} parent=5 // pred_fallthru
      _
  $region6: #{ce_dice_loss.1} parent=0 // loop_footer
    %s23 = sadd.s32 1, %s19
  $region7: #{ce_dice_loss.1} parent=0 // loop_footer_branch
    %18 = sbr.rel target = $region3
  $region8: #{ce_dice_loss.1} parent=0 // loop_exit
    _

</llo_original>
